<compile_context>
chip_gen: v7x
topology: tpu7x:2x2x1
jax: 0.10.0
libtpu: 0.0.40
codegen_flags: <defaults>
</compile_context>

<pallas_src>
import functools

import jax
import jax.numpy as jnp
from jax import lax
from jax.experimental import pallas as pl
from jax.experimental.pallas import tpu as pltpu


def _round_up(x, m):
    return ((x + m - 1) // m) * m


def _l_tiling(l_dim, sublane, max_tl, want_split):
    """Pick (TL, n_k, n_split) for the reduction axis.

    Balanced tiles (multiples of `sublane`, <= max_tl); optionally an even
    2-way split of the tiles so a second TensorCore gets work.
    """
    n_min = pl.cdiv(l_dim, max_tl)
    if want_split:
        n_min = max(n_min, 2)
    if n_min <= 1:
        return l_dim, 1, 1                      # single full-dim tile

    def _for(n_target):
        tl = _round_up(pl.cdiv(l_dim, n_target), sublane)
        return tl, pl.cdiv(l_dim, tl)

    tl, n_l = _for(n_min)
    if want_split and n_l > 1 and n_l % 2 != 0:
        tl2, n_l2 = _for(n_l + 1)
        if n_l2 >= 2 and n_l2 % 2 == 0:
            tl, n_l = tl2, n_l2
    if n_l <= 1:
        return l_dim, 1, 1
    if want_split and n_l % 2 == 0:
        return tl, n_l // 2, 2
    return tl, n_l, 1


def gap1d_kernel(x_ref, o_ref, *, inv_l, tl, n_k, l_valid, needs_mask):
    # x_ref: (TB, TL, C)   o_ref: (1, TB, C) f32 accumulator (resident over k)
    s = pl.program_id(0)          # reduction split (parallel)
    k = pl.program_id(2)          # reduction step  (arbitrary)

    @pl.when(k == 0)
    def _():
        o_ref[...] = jnp.zeros_like(o_ref)

    x = x_ref[...]
    if needs_mask:
        # Rows at/after l_valid (global L index) hold unspecified data; zero
        # them before the sum.  Only compiled when L % TL != 0.
        start = (s * n_k + k) * tl
        rows = lax.broadcasted_iota(jnp.int32, x.shape, dimension=1)
        x = jnp.where(rows < (l_valid - start), x, jnp.zeros_like(x))

    # Per-chunk sum accumulated in f32 directly into the resident output block
    # (dtype=f32 on the reduce avoids materializing an f32 copy of the tile).
    o_ref[...] += jnp.sum(x, axis=1, dtype=jnp.float32)[None]

    @pl.when(k == pl.num_programs(2) - 1)
    def _():
        o_ref[...] *= inv_l           # divide once by the TRUE L


def gap1d(x):
    """x: (B, L, C) -> (B, C), equivalent to torch x.mean(1)."""
    B, L, C = x.shape
    if jnp.issubdtype(x.dtype, jnp.floating):
        out_dtype = x.dtype
    else:
        out_dtype = jnp.float32    # torch.mean rejects integer dtypes; promote.
    itemsize = jnp.dtype(x.dtype).itemsize
    sublane = {4: 8, 2: 16, 1: 32}.get(itemsize, 8)

    # --- Small-C lane densification: fold L into lanes (contiguous reshape,
    #     no padded HBM copy). --------------------------------------------------
    g = 1
    if C < 128:
        g_try = -(-128 // C)                    # ceil(128 / C)
        if g_try > 1 and L % g_try == 0 and L // g_try >= 1:
            g = g_try
    L_eff, C_eff = L // g, g * C
    x_eff = x if g == 1 else x.reshape(B, L_eff, C_eff)

    # --- Tile selection: big, VMEM-budgeted blocks (double-buffered input). ---
    per_buffer_budget = 16 * 1024 * 1024        # per input buffer

    row_bytes = max(1, L_eff * C_eff * itemsize)      # one batch row, full L
    if B <= 8:
        tb = B                                        # full dim is always legal
    else:
        tb_cap = max(8, (per_buffer_budget // row_bytes) // 8 * 8)
        if B >= 16:
            # Keep >= 2 B-tiles so both v7x TensorCores get work.
            tb_cap = min(tb_cap, _round_up(pl.cdiv(B, 2), 8))
        tb = B if B <= tb_cap else tb_cap

    n_b = pl.cdiv(B, tb)
    tile_row_bytes = max(1, tb * C_eff * itemsize)
    max_tl = max(sublane,
                 (per_buffer_budget // tile_row_bytes) // sublane * sublane)

    tl, n_k, n_split = _l_tiling(L_eff, sublane, max_tl, want_split=(n_b < 2))
    needs_mask = (L_eff % tl) != 0

    grid = (n_split, n_b, n_k)

    kernel = functools.partial(
        gap1d_kernel, inv_l=1.0 / float(L), tl=tl, n_k=n_k,
        l_valid=L_eff, needs_mask=needs_mask)

    cost = pl.CostEstimate(
        flops=B * L * C,
        transcendentals=0,
        bytes_accessed=B * L * C * itemsize + n_split * B * C_eff * 4,
    )

    partial_out = pl.pallas_call(
        kernel,
        out_shape=jax.ShapeDtypeStruct((n_split, B, C_eff), jnp.float32),
        grid_spec=pltpu.PrefetchScalarGridSpec(
            num_scalar_prefetch=0,
            grid=grid,
            in_specs=[pl.BlockSpec((tb, tl, C_eff),
                                   lambda s, i, k: (i, s * n_k + k, 0))],
            out_specs=pl.BlockSpec((1, tb, C_eff), lambda s, i, k: (s, i, 0)),
        ),
        compiler_params=pltpu.CompilerParams(
            dimension_semantics=("parallel", "parallel", "arbitrary"),
            vmem_limit_bytes=48 * 1024 * 1024,
        ),
        cost_estimate=cost,
    )(x_eff)

    out = jnp.sum(partial_out, axis=0)                 # combine reduction splits
    if g > 1:
        out = jnp.sum(out.reshape(B, g, C), axis=1)    # finish the lane fold
    return out.astype(out_dtype)


if __name__ == "__main__":
    key = jax.random.PRNGKey(0)
    B, L, C = 2, 8, 32
    x = jax.random.normal(key, (B, L, C), dtype=jnp.float32)

    out = gap1d(x)
    jax.block_until_ready(out)

    # Reference check against plain JAX (same semantics as torch x.mean(1)).
    ref = jnp.mean(x, axis=1)
    assert out.shape == (B, C)
    assert jnp.allclose(out, ref, atol=1e-5, rtol=1e-5)

    print("KERNEL_OK")
</pallas_src>

<mosaic_0001>
module attributes {stable_mosaic.version = 11 : i64} {
  func.func @gap1d_kernel(%arg0: i32, %arg1: i32, %arg2: i32, %arg3: memref<2x2x128xf32, #tpu.memory_space<vmem>>, %arg4: memref<1x2x128xf32, #tpu.memory_space<vmem>>) attributes {dimension_semantics = [#tpu.dimension_semantics<parallel>, #tpu.dimension_semantics<parallel>, #tpu.dimension_semantics<arbitrary>], iteration_bounds = array<i64: 1, 1, 1>, scalar_prefetch = 0 : i64, scratch_operands = 0 : i64, tpu.core_type = #tpu.core_type<tc>, window_params = [{transform_indices = @transform_0, window_bounds = array<i64: 2, 2, 128>}, {transform_indices = @transform_1, window_bounds = array<i64: 1, 2, 128>}]} {
    %c0_i32 = arith.constant 0 : i32
    %0 = arith.cmpi eq, %arg2, %c0_i32 : i32
    %1 = arith.extui %0 : i1 to i32
    %c0_i32_0 = arith.constant 0 : i32
    %2 = arith.cmpi ne, %1, %c0_i32_0 : i32
    scf.if %2 {
      %cst_11 = arith.constant 0.000000e+00 : f32
      %12 = vector.broadcast %cst_11 : f32 to vector<1x2x128xf32>
      %c0_12 = arith.constant 0 : index
      %c0_13 = arith.constant 0 : index
      %c0_14 = arith.constant 0 : index
      %13 = vector.load %arg4[%c0_12, %c0_13, %c0_14] : memref<1x2x128xf32, #tpu.memory_space<vmem>>, vector<1x2x128xf32>
      tpu.vector_store %arg4[%c0_12, %c0_13, %c0_14], %12 {strides = array<i32>} : memref<1x2x128xf32, #tpu.memory_space<vmem>>, vector<1x2x128xf32>,
    } else {
    }
    %c0 = arith.constant 0 : index
    %c0_1 = arith.constant 0 : index
    %c0_2 = arith.constant 0 : index
    %3 = vector.load %arg3[%c0, %c0_1, %c0_2] : memref<2x2x128xf32, #tpu.memory_space<vmem>>, vector<2x2x128xf32>
    %c0_3 = arith.constant 0 : index
    %c0_4 = arith.constant 0 : index
    %c0_5 = arith.constant 0 : index
    %4 = vector.load %arg4[%c0_3, %c0_4, %c0_5] : memref<1x2x128xf32, #tpu.memory_space<vmem>>, vector<1x2x128xf32>
    %cst = arith.constant dense<0.000000e+00> : vector<2x128xf32>
    %5 = vector.multi_reduction <add>, %3, %cst [1] : vector<2x2x128xf32> to vector<2x128xf32>
    %6 = vector.shape_cast %5 : vector<2x128xf32> to vector<1x2x128xf32>
    %7 = arith.addf %4, %6 : vector<1x2x128xf32>
    %c0_6 = arith.constant 0 : index
    %c0_7 = arith.constant 0 : index
    %c0_8 = arith.constant 0 : index
    %8 = vector.load %arg4[%c0_6, %c0_7, %c0_8] : memref<1x2x128xf32, #tpu.memory_space<vmem>>, vector<1x2x128xf32>
    tpu.vector_store %arg4[%c0_6, %c0_7, %c0_8], %7 {strides = array<i32>} : memref<1x2x128xf32, #tpu.memory_space<vmem>>, vector<1x2x128xf32>,
    %c0_i32_9 = arith.constant 0 : i32
    %9 = arith.cmpi eq, %arg2, %c0_i32_9 : i32
    %10 = arith.extui %9 : i1 to i32
    %c0_i32_10 = arith.constant 0 : i32
    %11 = arith.cmpi ne, %10, %c0_i32_10 : i32
    scf.if %11 {
      %c0_11 = arith.constant 0 : index
      %c0_12 = arith.constant 0 : index
      %c0_13 = arith.constant 0 : index
      %12 = vector.load %arg4[%c0_11, %c0_12, %c0_13] : memref<1x2x128xf32, #tpu.memory_space<vmem>>, vector<1x2x128xf32>
      %cst_14 = arith.constant 1.250000e-01 : f32
      %13 = vector.broadcast %cst_14 : f32 to vector<1x2x128xf32>
      %14 = arith.mulf %12, %13 : vector<1x2x128xf32>
      %c0_15 = arith.constant 0 : index
      %c0_16 = arith.constant 0 : index
      %c0_17 = arith.constant 0 : index
      %15 = vector.load %arg4[%c0_15, %c0_16, %c0_17] : memref<1x2x128xf32, #tpu.memory_space<vmem>>, vector<1x2x128xf32>
      tpu.vector_store %arg4[%c0_15, %c0_16, %c0_17], %14 {strides = array<i32>} : memref<1x2x128xf32, #tpu.memory_space<vmem>>, vector<1x2x128xf32>,
    } else {
    }
    return
  }
  func.func @transform_0(%arg0: i32, %arg1: i32, %arg2: i32) -> (i32, i32, i32) {
    %c1_i32 = arith.constant 1 : i32
    %0 = arith.muli %arg0, %c1_i32 : i32
    %1 = arith.addi %0, %arg2 : i32
    %c0_i32 = arith.constant 0 : i32
    %c0_i32_0 = arith.constant 0 : i32
    return %arg1, %1, %c0_i32 : i32, i32, i32
  }
  func.func @transform_1(%arg0: i32, %arg1: i32, %arg2: i32) -> (i32, i32, i32) {
    %c0_i32 = arith.constant 0 : i32
    %c0_i32_0 = arith.constant 0 : i32
    return %arg0, %arg1, %c0_i32 : i32, i32, i32
  }
}

</mosaic_0001>

<llo_original>
// kernel: tpu_custom_call.1
$region0: #{tpu_custom_call.1}
  #allocation0 [shape = 'u32[]', space=smem, size = 0x4, offset = 0x4, fixed_abs, tag = 'smem constant byte address 0x4 - core index']
  #allocation1 [shape = 'u32[144,128]{1,0:T(1,128)}', space=vmem, size = 0x12000, scoped, tag = 'internal scratch']
  %s0 = inlined_call_operand.hbm [shape: f32[2,2,128], index: 0, kind: input, shape index: {}]
  %s1 = inlined_call_operand.hbm [shape: f32[1,2,128], index: 1, kind: output, shape index: {}]
  %s2 = sld [smem:[#allocation0]]
  $region26: #{tpu_custom_call.1} parent=0
    _
  %s4 = ssub.s32 1, %s2
  %s5 = scalar_select 0, %s4, %s2
  $region1: #{tpu_custom_call.1} parent=0
    #allocation2 [shape = 'u8[2048]{0}', space=vmem, size = 0x800, scoped, tag = 'input window, operand 0, single buffered']
    #allocation3 [shape = 's32[1]{0}', space=sflag, size = 0x4, scoped, tag = 'scoped memory for tpu_custom_call.1']
    #allocation4 [shape = 's32[1]{0}', space=sflag, size = 0x4, scoped, tag = 'scoped memory for tpu_custom_call.1']
    #allocation5 [shape = 'u8[1024]{0}', space=vmem, size = 0x400, scoped, tag = 'output window, operand 0, single buffered']
    %6 = vsyncpa [#allocation3], 0
    %7 = vsyncpa [#allocation4], 0
    // Predicated region
    $region2: #{tpu_custom_call.1} parent=1 // pred_check
      _
    $region3: #{tpu_custom_call.1} parent=1 // pred_check_branch
      %9 = sbr.rel (0) target = $region5
    $region4: #{tpu_custom_call.1} parent=1 // pred_region
      %s10 = sadd.s32 0, 0
      %s12 = ssub.s32 64, 64
      %13 = vsyncadd [#allocation3], %s12
      %s14 = smul.addr %s10, 32
      %s15 = scalar_lea.hbm %s0, %s14
      %s16 = sshll.u32 [#allocation2], 4
      %s17 = int_to_ptr.vmem [resolvable:$true] %s16
      %22 = dma.hbm_to_vmem [thread:$0]  %s15, 64, %s17, [#allocation3], 32, 32, 2
    $region5: #{tpu_custom_call.1} parent=1 // pred_fallthru
      _
    // Predicated region
    $region6: #{tpu_custom_call.1} parent=1 // pred_check
      _
    $region7: #{tpu_custom_call.1} parent=1 // pred_check_branch
      %24 = sbr.rel (0) target = $region9
    $region8: #{tpu_custom_call.1} parent=1 // pred_region
      %25 = dma.done [#allocation3], 64
    $region9: #{tpu_custom_call.1} parent=1 // pred_fallthru
      _
    %s26 = sadd.s32 0, 0
    %p27 = scmp.eq.s32.totalorder 0, 0
    // Predicated region
    $region10: #{tpu_custom_call.1} parent=1 // pred_check
      %p28 = pneg %p27
    $region11: #{tpu_custom_call.1} parent=1 // pred_check_branch
      %30 = sbr.rel (%p28) target = $region13
    $region12: #{tpu_custom_call.1} parent=1 // pred_region
      %31 = vst [vmem:[#allocation5] sm:$0x3] 0.0
    $region13: #{tpu_custom_call.1} parent=1 // pred_fallthru
      _
    %v32 = vld [vmem:[#allocation2] sm:$0x3]
    %v33 = vld [vmem:[#allocation2 + $0x2] sm:$0x3]
    %v34 = vld [vmem:[#allocation5] sm:$0x3]
    %vm35 = vcmask 1041408
    %v36 = vsel %vm35, %v32, 0.0
    %v37 = vrot.slane %v36, 4
    %v38 = vadd.f32 %v36, %v37
    %v39 = vrot.slane %v38, 2
    %v40 = vadd.f32 %v38, %v39
    %v41 = vrot.slane %v40, 1
    %v42 = vadd.f32 %v40, %v41
    %v43 = vsel %vm35, %v33, 0.0
    %v44 = vrot.slane %v43, 4
    %v45 = vadd.f32 %v43, %v44
    %v46 = vrot.slane %v45, 2
    %v47 = vadd.f32 %v45, %v46
    %v48 = vrot.slane %v47, 1
    %v49 = vadd.f32 %v47, %v48
    %vm52 = vcmask 1041409
    %v53 = vsel %vm52, %v49, %v42
    %v55 = vadd.f32 %v34, %v53
    %56 = vst [vmem:[#allocation5] sm:$0x3] %v55
    // Predicated region
    $region14: #{tpu_custom_call.1} parent=1 // pred_check
      %p57 = pneg %p27
    $region15: #{tpu_custom_call.1} parent=1 // pred_check_branch
      %59 = sbr.rel (%p57) target = $region17
    $region16: #{tpu_custom_call.1} parent=1 // pred_region
      %v60 = vld [vmem:[#allocation5] sm:$0x3]
      %v61 = vmul.f32 %v60, 0.125
      %62 = vst [vmem:[#allocation5] sm:$0x3] %v61
    $region17: #{tpu_custom_call.1} parent=1 // pred_fallthru
      _
    // Predicated region
    $region18: #{tpu_custom_call.1} parent=1 // pred_check
      _
    $region19: #{tpu_custom_call.1} parent=1 // pred_check_branch
      %64 = sbr.rel (0) target = $region21
    $region20: #{tpu_custom_call.1} parent=1 // pred_region
      %s66 = ssub.s32 32, 32
      %67 = vsyncadd [#allocation4], %s66
      %s69 = sshll.u32 [#allocation5], 4
      %s70 = int_to_ptr.vmem [resolvable:$true] %s69
      %72 = dma.vmem_to_hbm [thread:$0]  %s70, 32, %s1, [#allocation4]
    $region21: #{tpu_custom_call.1} parent=1 // pred_fallthru
      _
    // Predicated region
    $region22: #{tpu_custom_call.1} parent=1 // pred_check
      _
    $region23: #{tpu_custom_call.1} parent=1 // pred_check_branch
      %74 = sbr.rel (0) target = $region25
    $region24: #{tpu_custom_call.1} parent=1 // pred_region
      %75 = dma.done [#allocation4], 32
    $region25: #{tpu_custom_call.1} parent=1 // pred_fallthru
      _
    %76 = vsyncpa [#allocation3], 1
    %77 = vsyncpa [#allocation4], 1

</llo_original>
